<compile_context>
chip_gen: v6e
topology: v6e:2x2x1
jax: 0.10.0
libtpu: 0.0.40
codegen_flags: <defaults>
</compile_context>

<pallas_src>
import functools

import jax
import jax.numpy as jnp
from jax.experimental import pallas as pl
from jax.experimental.pallas import tpu as pltpu


_TOKEN_TILE = 512   # max token rows per grid step; per-step VMEM footprint is
                    # tiny (<1 MiB) even under v7x's 64 MiB physical VMEM.
_LANE = 128


def _round_up(x, m):
    return (x + m - 1) // m * m


def _v2s_kernel(x_ref, wf_ref, bf_ref, w2_ref, b2_ref, out_ref):
    # x : (Nt, P)  bf16      wf: (P, H)   bf16     bf: (1, H)   f32
    # w2: (H, Dop) bf16      b2: (1, Dop) f32      out: (Nt, Dop) f32
    h = jnp.dot(x_ref[...], wf_ref[...],
                preferred_element_type=jnp.float32) + bf_ref[...]     # (Nt, H) f32
    # tanh-approx GELU on the EUP, kept in f32.
    # TODO(synk): PyTorch nn.GELU defaults to the erf form (~1e-3 rel diff);
    # switch to the exact variant if erf lowering is required for bit parity.
    h = jax.nn.gelu(h, approximate=True)
    y = jnp.dot(h.astype(jnp.bfloat16), w2_ref[...],
                preferred_element_type=jnp.float32) + b2_ref[...]     # (Nt, Dop) f32
    out_ref[...] = y.astype(out_ref.dtype)                            # unmasked, lane-dense


def _fused_forward(patches, wf, bf, w2p, b2p):
    """patches: (N, P) bf16.  Returns (N, Dop) f32 with Dop lane-padded."""
    N, P = patches.shape
    H = wf.shape[1]
    Dop = w2p.shape[1]

    # Token tile: fixed 512-row tiles for large N (pipelined, double-buffered),
    # shrink to a sublane-aligned single tile for tiny N.  Tail is zero-padded
    # (not silently dropped) and sliced off below.
    Nt = min(_TOKEN_TILE, _round_up(N, 8))
    n_pad = _round_up(N, Nt)
    if n_pad != N:
        patches = jnp.pad(patches, ((0, n_pad - N), (0, 0)))

    out = pl.pallas_call(
        _v2s_kernel,
        out_shape=jax.ShapeDtypeStruct((n_pad, Dop), jnp.float32),
        grid_spec=pltpu.PrefetchScalarGridSpec(
            num_scalar_prefetch=0,
            grid=(n_pad // Nt,),
            in_specs=[
                pl.BlockSpec((Nt, P), lambda i: (i, 0)),    # token tile (pipelined)
                pl.BlockSpec((P, H), lambda i: (0, 0)),     # fused patch-embed+fc1 W
                pl.BlockSpec((1, H), lambda i: (0, 0)),     # fused bias (f32)
                pl.BlockSpec((H, Dop), lambda i: (0, 0)),   # fc2 weight (lane-padded)
                pl.BlockSpec((1, Dop), lambda i: (0, 0)),   # fc2 bias (lane-padded)
            ],
            out_specs=pl.BlockSpec((Nt, Dop), lambda i: (i, 0)),
        ),
        compiler_params=pltpu.CompilerParams(
            dimension_semantics=("parallel",)),     # megacore split on v7x
    )(patches, wf, bf, w2p, b2p)
    return out[:N]


def _prepare_fused_params(params):
    """Fold patch-embed into fc1 (no nonlinearity between) and lane-pad fc2."""
    w_pe, b_pe = params["w_pe"], params["b_pe"]
    w1, b1 = params["w1"], params["b1"]
    w2, b2 = params["w2"], params["b2"]
    do = w2.shape[1]
    dop = _round_up(do, _LANE)

    w_fused = (w_pe.astype(jnp.float32) @ w1.astype(jnp.float32)).astype(jnp.bfloat16)
    b_fused = (b_pe.astype(jnp.float32) @ w1.astype(jnp.float32)
               + b1.astype(jnp.float32))                                   # (1, H) f32
    w2_pad = jnp.pad(w2, ((0, 0), (0, dop - do))).astype(jnp.bfloat16)     # (H, Dop)
    b2_pad = jnp.pad(b2, ((0, 0), (0, dop - do))).astype(jnp.float32)      # (1, Dop)
    return w_fused, b_fused, w2_pad, b2_pad, do


def patchify_nchw(img, patch):
    """(B, C, H, W) -> (B*T, C*p*p) bf16, T = (H/p)*(W/p).  Plain-JAX glue."""
    B, C, H, W = img.shape
    p = patch
    hp, wp = H // p, W // p
    x = img.astype(jnp.bfloat16).reshape(B, C, hp, p, wp, p)   # cast early: half the transpose bytes
    # -> (B, hp, wp, C, p, p): token-major rows, (C, p, p)-major features, matching
    #    Conv2d weight layout (D, C, p, p) flattened over (C, p, p).
    x = jnp.transpose(x, (0, 2, 4, 1, 3, 5))
    # TODO(synk): this transpose is a standalone XLA op (one extra HBM round trip
    # of the bf16 image); fold it into the pallas_call via allow_input_fusion /
    # an index_map gather if it ever dominates profiles.
    return x.reshape(B * hp * wp, C * p * p), B, hp * wp


@functools.partial(jax.jit, static_argnames=("patch",))
def _forward_jit(img, params, patch):
    patches, B, T = patchify_nchw(img, patch)
    wf, bf, w2p, b2p, do = _prepare_fused_params(params)
    flat = _fused_forward(patches, wf, bf, w2p, b2p)        # (B*T, Dop) f32
    return flat[:, :do].reshape(B, T, do)                   # drop lane padding


def visual2set_forward(img, params, set_=None, *, patch=4):
    assert img.ndim == 4, f"Input image expect 4D tensor but got {img.ndim}-D."
    if set_ is not None:
        assert set_.ndim == 3, f"Input set expect 3D tensor but got {set_.ndim}-D."
    output = _forward_jit(img, params, patch)                # generated set (B, T, Do)
    if set_ is not None:
        num_out_token = set_.shape[1] + 1
        return output[:, -num_out_token:]
    return output


def init_params(key, *, in_ch=4, patch=4, embed=32, hidden=64, out_dim=32):
    P = in_ch * patch * patch
    ks = jax.random.split(key, 6)
    scale = 0.02
    return {
        "w_pe": scale * jax.random.normal(ks[0], (P, embed), jnp.float32),
        "b_pe": scale * jax.random.normal(ks[1], (1, embed), jnp.float32),
        "w1":   scale * jax.random.normal(ks[2], (embed, hidden), jnp.float32),
        "b1":   scale * jax.random.normal(ks[3], (1, hidden), jnp.float32),
        "w2":   scale * jax.random.normal(ks[4], (hidden, out_dim), jnp.float32),
        "b2":   scale * jax.random.normal(ks[5], (1, out_dim), jnp.float32),
    }


def _reference_forward(img, params, patch):
    """Pure-JAX f32 reference of the un-fused forward path (for validation)."""
    B, C, H, W = img.shape
    p = patch
    hp, wp = H // p, W // p
    x = img.reshape(B, C, hp, p, wp, p).transpose(0, 2, 4, 1, 3, 5)
    x = x.reshape(B * hp * wp, C * p * p).astype(jnp.float32)
    emb = x @ params["w_pe"] + params["b_pe"]
    h = jax.nn.gelu(emb @ params["w1"] + params["b1"], approximate=True)
    y = h @ params["w2"] + params["b2"]
    return y.reshape(B, hp * wp, -1)


if __name__ == "__main__":
    # TODO(synk): stop_detector / correction submodules are never invoked in
    # Visual2Set.forward, so they are not materialized here.
    key = jax.random.PRNGKey(0)
    k_img, k_set, k_par = jax.random.split(key, 3)

    B, C, Himg, Wimg = 2, 4, 16, 16
    patch, embed, hidden, out_dim = 4, 32, 64, 32

    img = jax.random.normal(k_img, (B, C, Himg, Wimg), jnp.float32)
    params = init_params(k_par, in_ch=C, patch=patch, embed=embed,
                         hidden=hidden, out_dim=out_dim)

    # Path 1: set=None -> full generated set (B, T, out_dim)
    out_full = visual2set_forward(img, params, set_=None, patch=patch)
    out_full = jax.block_until_ready(out_full)

    # Path 2: with a reference set -> last (set_len + 1) tokens
    set_len = 8
    ref_set = jax.random.normal(k_set, (B, set_len, out_dim), jnp.float32)
    out_pred = visual2set_forward(img, params, set_=ref_set, patch=patch)
    out_pred = jax.block_until_ready(out_pred)

    T = (Himg // patch) * (Wimg // patch)
    assert out_full.shape == (B, T, out_dim)
    assert out_pred.shape == (B, set_len + 1, out_dim)

    # Numerical check against the un-fused pure-JAX f32 reference (bf16 tolerance).
    ref = jax.block_until_ready(_reference_forward(img, params, patch))
    import numpy as np
    np.testing.assert_allclose(np.asarray(out_full), np.asarray(ref),
                               rtol=5e-2, atol=5e-3)
    np.testing.assert_allclose(np.asarray(out_pred),
                               np.asarray(ref[:, -(set_len + 1):]),
                               rtol=5e-2, atol=5e-3)
    print("KERNEL_OK")
</pallas_src>

<mosaic_0001>
module attributes {stable_mosaic.version = 11 : i64} {
  func.func @_v2s_kernel(%arg0: i32, %arg1: memref<32x64xbf16, #tpu.memory_space<vmem>>, %arg2: memref<64x64xbf16, #tpu.memory_space<vmem>>, %arg3: memref<1x64xf32, #tpu.memory_space<vmem>>, %arg4: memref<64x128xbf16, #tpu.memory_space<vmem>>, %arg5: memref<1x128xf32, #tpu.memory_space<vmem>>, %arg6: memref<32x128xf32, #tpu.memory_space<vmem>>) attributes {dimension_semantics = [#tpu.dimension_semantics<parallel>], iteration_bounds = array<i64: 1>, scalar_prefetch = 0 : i64, scratch_operands = 0 : i64, tpu.core_type = #tpu.core_type<tc>, window_params = [{transform_indices = @transform_0, window_bounds = array<i64: 32, 64>}, {pipeline_mode = #tpu.pipeline_mode<synchronous>, transform_indices = @transform_1, window_bounds = array<i64: 64, 64>}, {pipeline_mode = #tpu.pipeline_mode<synchronous>, transform_indices = @transform_2, window_bounds = array<i64: 1, 64>}, {pipeline_mode = #tpu.pipeline_mode<synchronous>, transform_indices = @transform_3, window_bounds = array<i64: 64, 128>}, {pipeline_mode = #tpu.pipeline_mode<synchronous>, transform_indices = @transform_4, window_bounds = array<i64: 1, 128>}, {transform_indices = @transform_5, window_bounds = array<i64: 32, 128>}]} {
    %c0 = arith.constant 0 : index
    %c0_0 = arith.constant 0 : index
    %0 = vector.load %arg1[%c0, %c0_0] : memref<32x64xbf16, #tpu.memory_space<vmem>>, vector<32x64xbf16>
    %c0_1 = arith.constant 0 : index
    %c0_2 = arith.constant 0 : index
    %1 = vector.load %arg2[%c0_1, %c0_2] : memref<64x64xbf16, #tpu.memory_space<vmem>>, vector<64x64xbf16>
    %cst = arith.constant dense<0.000000e+00> : vector<32x64xf32>
    %2 = tpu.matmul %0, %1, %cst {dimension_numbers = #tpu.dot_dimension_numbers<[1], [0], [0], [1], [0, 0, 1, 1], [], []>} : vector<32x64xbf16>, vector<64x64xbf16>, vector<32x64xf32> -> vector<32x64xf32>
    %c0_3 = arith.constant 0 : index
    %c0_4 = arith.constant 0 : index
    %3 = vector.load %arg3[%c0_3, %c0_4] : memref<1x64xf32, #tpu.memory_space<vmem>>, vector<1x64xf32>
    %4 = vector.broadcast %3 : vector<1x64xf32> to vector<32x64xf32>
    %5 = arith.addf %2, %4 : vector<32x64xf32>
    %6 = arith.mulf %5, %5 : vector<32x64xf32>
    %7 = arith.mulf %5, %6 : vector<32x64xf32>
    %cst_5 = arith.constant 4.471500e-02 : f32
    %8 = vector.broadcast %cst_5 : f32 to vector<32x64xf32>
    %9 = arith.mulf %8, %7 : vector<32x64xf32>
    %10 = arith.addf %5, %9 : vector<32x64xf32>
    %cst_6 = arith.constant 0.797884583 : f32
    %11 = vector.broadcast %cst_6 : f32 to vector<32x64xf32>
    %12 = arith.mulf %11, %10 : vector<32x64xf32>
    %13 = math.tanh %12 : vector<32x64xf32>
    %cst_7 = arith.constant 1.000000e+00 : f32
    %14 = vector.broadcast %cst_7 : f32 to vector<32x64xf32>
    %15 = arith.addf %14, %13 : vector<32x64xf32>
    %cst_8 = arith.constant 5.000000e-01 : f32
    %16 = vector.broadcast %cst_8 : f32 to vector<32x64xf32>
    %17 = arith.mulf %16, %15 : vector<32x64xf32>
    %18 = arith.mulf %5, %17 : vector<32x64xf32>
    %19 = arith.truncf %18 : vector<32x64xf32> to vector<32x64xbf16>
    %c0_9 = arith.constant 0 : index
    %c0_10 = arith.constant 0 : index
    %20 = vector.load %arg4[%c0_9, %c0_10] : memref<64x128xbf16, #tpu.memory_space<vmem>>, vector<64x128xbf16>
    %cst_11 = arith.constant dense<0.000000e+00> : vector<32x128xf32>
    %21 = tpu.matmul %19, %20, %cst_11 {dimension_numbers = #tpu.dot_dimension_numbers<[1], [0], [0], [1], [0, 0, 1, 1], [], []>} : vector<32x64xbf16>, vector<64x128xbf16>, vector<32x128xf32> -> vector<32x128xf32>
    %c0_12 = arith.constant 0 : index
    %c0_13 = arith.constant 0 : index
    %22 = vector.load %arg5[%c0_12, %c0_13] : memref<1x128xf32, #tpu.memory_space<vmem>>, vector<1x128xf32>
    %23 = vector.broadcast %22 : vector<1x128xf32> to vector<32x128xf32>
    %24 = arith.addf %21, %23 : vector<32x128xf32>
    %c0_14 = arith.constant 0 : index
    %c0_15 = arith.constant 0 : index
    %25 = vector.load %arg6[%c0_14, %c0_15] : memref<32x128xf32, #tpu.memory_space<vmem>>, vector<32x128xf32>
    tpu.vector_store %arg6[%c0_14, %c0_15], %24 {strides = array<i32>} : memref<32x128xf32, #tpu.memory_space<vmem>>, vector<32x128xf32>,
    return
  }
  func.func @transform_0(%arg0: i32) -> (i32, i32) {
    %c0_i32 = arith.constant 0 : i32
    %c0_i32_0 = arith.constant 0 : i32
    return %arg0, %c0_i32 : i32, i32
  }
  func.func @transform_1(%arg0: i32) -> (i32, i32) {
    %c0_i32 = arith.constant 0 : i32
    %c0_i32_0 = arith.constant 0 : i32
    %c0_i32_1 = arith.constant 0 : i32
    return %c0_i32, %c0_i32_0 : i32, i32
  }
  func.func @transform_2(%arg0: i32) -> (i32, i32) {
    %c0_i32 = arith.constant 0 : i32
    %c0_i32_0 = arith.constant 0 : i32
    %c0_i32_1 = arith.constant 0 : i32
    return %c0_i32, %c0_i32_0 : i32, i32
  }
  func.func @transform_3(%arg0: i32) -> (i32, i32) {
    %c0_i32 = arith.constant 0 : i32
    %c0_i32_0 = arith.constant 0 : i32
    %c0_i32_1 = arith.constant 0 : i32
    return %c0_i32, %c0_i32_0 : i32, i32
  }
  func.func @transform_4(%arg0: i32) -> (i32, i32) {
    %c0_i32 = arith.constant 0 : i32
    %c0_i32_0 = arith.constant 0 : i32
    %c0_i32_1 = arith.constant 0 : i32
    return %c0_i32, %c0_i32_0 : i32, i32
  }
  func.func @transform_5(%arg0: i32) -> (i32, i32) {
    %c0_i32 = arith.constant 0 : i32
    %c0_i32_0 = arith.constant 0 : i32
    return %arg0, %c0_i32 : i32, i32
  }
}

</mosaic_0001>

<llo_original>
// kernel: _forward_jit.1
$region0: #{_forward_jit.1}
  #allocation0 [shape = 'u32[]', space=smem, size = 0x4, offset = 0x4, fixed_abs, tag = 'smem constant byte address 0x4 - core index']
  #allocation1 [shape = 'u32[144,128]{1,0:T(1,128)}', space=vmem, size = 0x12000, scoped, tag = 'internal scratch']
  %s0 = inlined_call_operand.vmem [shape: bf16[32,64], index: 0, kind: input, shape index: {}]
  %s1 = inlined_call_operand.vmem [shape: bf16[64,64], index: 1, kind: input, shape index: {}]
  %s2 = inlined_call_operand.vmem [shape: f32[1,64], index: 2, kind: input, shape index: {}]
  %s3 = inlined_call_operand.vmem [shape: bf16[64,128], index: 3, kind: input, shape index: {}]
  %s4 = inlined_call_operand.vmem [shape: f32[1,128], index: 4, kind: input, shape index: {}]
  %s5 = inlined_call_operand.hbm [shape: f32[32,128], index: 5, kind: output, shape index: {}]
  %s6 = sld [smem:[#allocation0]]
  $region30: #{_forward_jit.1} parent=0
    _
  %s8 = ssub.s32 1, %s6
  %s9 = scalar_select 0, %s8, %s6
  $region1: #{_forward_jit.1} parent=0
    #allocation2 [shape = 'u8[16384]{0}', space=vmem, size = 0x4000, scoped, tag = 'output window, operand 0, single buffered']
    #allocation3 [shape = 's32[1]{0}', space=sflag, size = 0x4, scoped, tag = 'scoped memory for _forward_jit.1']
    %10 = vsyncpa [#allocation3], 0
    // Predicated region
    $region2: #{_forward_jit.1} parent=1 // pred_check
      _
    $region3: #{_forward_jit.1} parent=1 // pred_check_branch
      %12 = sbr.rel (0) target = $region5
    $region4: #{_forward_jit.1} parent=1 // pred_region
      _
    $region5: #{_forward_jit.1} parent=1 // pred_fallthru
      _
    // Predicated region
    $region6: #{_forward_jit.1} parent=1 // pred_check
      _
    $region7: #{_forward_jit.1} parent=1 // pred_check_branch
      %14 = sbr.rel (0) target = $region9
    $region8: #{_forward_jit.1} parent=1 // pred_region
      _
    $region9: #{_forward_jit.1} parent=1 // pred_fallthru
      _
    // Predicated region
    $region10: #{_forward_jit.1} parent=1 // pred_check
      _
    $region11: #{_forward_jit.1} parent=1 // pred_check_branch
      %16 = sbr.rel (0) target = $region13
    $region12: #{_forward_jit.1} parent=1 // pred_region
      _
    $region13: #{_forward_jit.1} parent=1 // pred_fallthru
      _
    // Predicated region
    $region14: #{_forward_jit.1} parent=1 // pred_check
      _
    $region15: #{_forward_jit.1} parent=1 // pred_check_branch
      %18 = sbr.rel (0) target = $region17
    $region16: #{_forward_jit.1} parent=1 // pred_region
      _
    $region17: #{_forward_jit.1} parent=1 // pred_fallthru
      _
    // Predicated region
    $region18: #{_forward_jit.1} parent=1 // pred_check
      _
    $region19: #{_forward_jit.1} parent=1 // pred_check_branch
      %20 = sbr.rel (0) target = $region21
    $region20: #{_forward_jit.1} parent=1 // pred_region
      _
    $region21: #{_forward_jit.1} parent=1 // pred_fallthru
      _
    %v22 = vld [vmem:[%s0] sm:$0xf]
    %v23 = vld [vmem:[%s0 + $0x4] sm:$0xf]
    %v24 = vld [vmem:[%s0 + $0x8] sm:$0xf]
    %v25 = vld [vmem:[%s0 + $0xc] sm:$0xf]
    %v26 = vld [vmem:[%s1] sm:$0xf]
    %v27 = vld [vmem:[%s1 + $0x4] sm:$0xf]
    %v28 = vld [vmem:[%s1 + $0x8] sm:$0xf]
    %v29 = vld [vmem:[%s1 + $0xc] sm:$0xf]
    %v30 = vld [vmem:[%s1 + $0x10] sm:$0xf]
    %v31 = vld [vmem:[%s1 + $0x14] sm:$0xf]
    %v32 = vld [vmem:[%s1 + $0x18] sm:$0xf]
    %v33 = vld [vmem:[%s1 + $0x1c] sm:$0xf]
    %v34 = vld [vmem:[%s2] sm:$0x1]
    %v36 = vlaneseq
    %v37 = vshrl.u32 %v36, 7
    %v38 = vsub.s32 0, %v37
    %v39 = vrot.slane %v34, %v38
    %v45 = vunpack.c.l.b16 %v22
    %v46 = vunpack.c.l.b16 %v23
    %v47 = vunpack.c.l.b16 %v24
    %v48 = vunpack.c.l.b16 %v25
    %v49 = vpack.c.b16 %v46, %v45
    %v50 = vpack.c.b16 %v48, %v47
    %v59 = vunpack.c.l.b16 %v26
    %v60 = vunpack.c.l.b16 %v27
    %v61 = vunpack.c.l.b16 %v28
    %v62 = vunpack.c.l.b16 %v29
    %v63 = vunpack.c.l.b16 %v30
    %v64 = vunpack.c.l.b16 %v31
    %v65 = vunpack.c.l.b16 %v32
    %v66 = vunpack.c.l.b16 %v33
    %v67 = vpack.c.b16 %v60, %v59
    %v68 = vpack.c.b16 %v62, %v61
    %v69 = vpack.c.b16 %v64, %v63
    %v70 = vpack.c.b16 %v66, %v65
    %vm75 = vcmask 523264
    %v77 = vsel %vm75, %v49, 0
    %v80 = vsel %vm75, %v50, 0
    %82 = vmatprep.subr.bf16.mxu0 0
    %83 = vmatpush1.bf16.msra.mxu0 0
    %84 = vmatprep.subr.bf16.mxu0 0
    %85 = vmatpush1.bf16.msra.mxu0 0
    %86 = vmatprep.subr.bf16.mxu0 0
    %87 = vmatpush1.bf16.msra.mxu0 0
    %88 = vmatprep.subr.bf16.mxu0 0
    %89 = vmatpush1.bf16.msra.mxu0 0
    %90 = vmatprep.subr.bf16.mxu0 0
    %91 = vmatpush1.bf16.msra.mxu0 %v70
    %92 = vmatprep.subr.bf16.mxu0 0
    %93 = vmatpush1.bf16.msra.mxu0 %v69
    %94 = vmatprep.subr.bf16.mxu0 0
    %95 = vmatpush1.bf16.msra.mxu0 %v68
    %96 = vmatprep.subr.bf16.mxu0 0
    %97 = vmatpush1.bf16.msra.mxu0 %v67
    %98 = vmatprep.subr.bf16.mxu0 0
    %99 = vmatpush2.bf16.msra.mxu0 0
    %100 = vmatprep.subr.bf16.mxu0 0
    %101 = vmatpush2.bf16.msra.mxu0 0
    %102 = vmatprep.subr.bf16.mxu0 0
    %103 = vmatpush2.bf16.msra.mxu0 0
    %104 = vmatprep.subr.bf16.mxu0 0
    %105 = vmatpush2.bf16.msra.mxu0 0
    %106 = vmatprep.subr.bf16.mxu0 0
    %107 = vmatpush2.bf16.msra.mxu0 0
    %108 = vmatprep.subr.bf16.mxu0 0
    %109 = vmatpush2.bf16.msra.mxu0 0
    %110 = vmatprep.subr.bf16.mxu0 0
    %111 = vmatpush2.bf16.msra.mxu0 0
    %112 = vmatprep.subr.bf16.mxu0 0
    %113 = vmatpush2.bf16.msra.mxu0 0
    %114 = vmatprep.mubr.bf16.mxu0 0
    %115 = vmatmul.mubr.bf16.gmra.mxu0 %v77
    %v116 = vpop.f32.mrf.mxu0
    %v117 = vadd.f32 %v39, %v116
    %v118 = vpop.f32.mrf.mxu0
    %v119 = vpop.f32.mrf.mxu0
    %v120 = vadd.f32 %v39, %v119
    %v121 = vpop.f32.mrf.mxu0
    %122 = vmatprep.mubr.bf16.mxu0 0
    %123 = vmatmul.mubr.bf16.gmra.mxu0 %v80
    %v124 = vpop.f32.mrf.mxu0
    %v125 = vadd.f32 %v39, %v124
    %v126 = vpop.f32.mrf.mxu0
    %v127 = vpop.f32.mrf.mxu0
    %v128 = vadd.f32 %v39, %v127
    %v129 = vpop.f32.mrf.mxu0
    %130 = vdwg.mxu0
    %v131 = vmul.f32 %v117, %v117
    %v132 = vmul.f32 %v120, %v120
    %v133 = vmul.f32 %v125, %v125
    %v134 = vmul.f32 %v128, %v128
    %v135 = vmul.f32 %v117, %v131
    %v136 = vmul.f32 %v120, %v132
    %v137 = vmul.f32 %v125, %v133
    %v138 = vmul.f32 %v128, %v134
    %v139 = vmul.f32 %v135, 0.044715
    %v140 = vmul.f32 %v136, 0.044715
    %v141 = vmul.f32 %v137, 0.044715
    %v142 = vmul.f32 %v138, 0.044715
    %v143 = vadd.f32 %v117, %v139
    %v144 = vadd.f32 %v120, %v140
    %v145 = vadd.f32 %v125, %v141
    %v146 = vadd.f32 %v128, %v142
    %v147 = vmul.f32 %v143, 0.7978846
    %v148 = vmul.f32 %v144, 0.7978846
    %v149 = vmul.f32 %v145, 0.7978846
    %v150 = vmul.f32 %v146, 0.7978846
    %v151 = vtanh.pop %v147
    %v152 = vtanh.pop %v148
    %v153 = vtanh.pop %v149
    %v154 = vtanh.pop %v150
    %v155 = vadd.f32 %v151, 1.0
    %v156 = vadd.f32 %v152, 1.0
    %v157 = vadd.f32 %v153, 1.0
    %v158 = vadd.f32 %v154, 1.0
    %v159 = vmul.f32 %v155, 0.5
    %v160 = vmul.f32 %v156, 0.5
    %v161 = vmul.f32 %v157, 0.5
    %v162 = vmul.f32 %v158, 0.5
    %v163 = vmul.f32 %v117, %v159
    %v164 = vmul.f32 %v120, %v160
    %v165 = vmul.f32 %v125, %v161
    %v166 = vmul.f32 %v128, %v162
    %v167 = vpack.c.bf16 %v164, %v163
    %v168 = vpack.c.bf16 %v166, %v165
    %v169 = vld [vmem:[%s3] sm:$0xf]
    %v170 = vld [vmem:[%s3 + $0x4] sm:$0xf]
    %v171 = vld [vmem:[%s3 + $0x8] sm:$0xf]
    %v172 = vld [vmem:[%s3 + $0xc] sm:$0xf]
    %v173 = vld [vmem:[%s3 + $0x10] sm:$0xf]
    %v174 = vld [vmem:[%s3 + $0x14] sm:$0xf]
    %v175 = vld [vmem:[%s3 + $0x18] sm:$0xf]
    %v176 = vld [vmem:[%s3 + $0x1c] sm:$0xf]
    %v177 = vld [vmem:[%s4] sm:$0x1]
    %v179 = vlaneseq
    %v180 = vshrl.u32 %v179, 7
    %v181 = vsub.s32 0, %v180
    %v182 = vrot.slane %v177, %v181
    %v192 = vunpack.c.l.b16 %v169
    %v193 = vunpack.c.l.b16 %v170
    %v194 = vunpack.c.l.b16 %v171
    %v195 = vunpack.c.l.b16 %v172
    %v196 = vunpack.c.l.b16 %v173
    %v197 = vunpack.c.l.b16 %v174
    %v198 = vunpack.c.l.b16 %v175
    %v199 = vunpack.c.l.b16 %v176
    %v200 = vpack.c.b16 %v193, %v192
    %v201 = vpack.c.b16 %v195, %v194
    %v202 = vpack.c.b16 %v197, %v196
    %v203 = vpack.c.b16 %v199, %v198
    %v209 = vsel %vm75, %v167, 0
    %v212 = vsel %vm75, %v168, 0
    %214 = vmatprep.subr.bf16.mxu0 0
    %215 = vmatpush1.bf16.msra.mxu0 0
    %216 = vmatprep.subr.bf16.mxu0 0
    %217 = vmatpush1.bf16.msra.mxu0 0
    %218 = vmatprep.subr.bf16.mxu0 0
    %219 = vmatpush1.bf16.msra.mxu0 0
    %220 = vmatprep.subr.bf16.mxu0 0
    %221 = vmatpush1.bf16.msra.mxu0 0
    %222 = vmatprep.subr.bf16.mxu0 0
    %223 = vmatpush1.bf16.msra.mxu0 %v203
    %224 = vmatprep.subr.bf16.mxu0 0
    %225 = vmatpush1.bf16.msra.mxu0 %v202
    %226 = vmatprep.subr.bf16.mxu0 0
    %227 = vmatpush1.bf16.msra.mxu0 %v201
    %228 = vmatprep.subr.bf16.mxu0 0
    %229 = vmatpush1.bf16.msra.mxu0 %v200
    %230 = vmatprep.subr.bf16.mxu0 0
    %231 = vmatpush2.bf16.msra.mxu0 0
    %232 = vmatprep.subr.bf16.mxu0 0
    %233 = vmatpush2.bf16.msra.mxu0 0
    %234 = vmatprep.subr.bf16.mxu0 0
    %235 = vmatpush2.bf16.msra.mxu0 0
    %236 = vmatprep.subr.bf16.mxu0 0
    %237 = vmatpush2.bf16.msra.mxu0 0
    %238 = vmatprep.subr.bf16.mxu0 0
    %239 = vmatpush2.bf16.msra.mxu0 0
    %240 = vmatprep.subr.bf16.mxu0 0
    %241 = vmatpush2.bf16.msra.mxu0 0
    %242 = vmatprep.subr.bf16.mxu0 0
    %243 = vmatpush2.bf16.msra.mxu0 0
    %244 = vmatprep.subr.bf16.mxu0 0
    %245 = vmatpush2.bf16.msra.mxu0 0
    %246 = vmatprep.mubr.bf16.mxu0 0
    %247 = vmatmul.mubr.bf16.gmra.mxu0 %v209
    %v248 = vpop.f32.mrf.mxu0
    %v249 = vadd.f32 %v182, %v248
    %v250 = vpop.f32.mrf.mxu0
    %v251 = vpop.f32.mrf.mxu0
    %v252 = vadd.f32 %v182, %v251
    %v253 = vpop.f32.mrf.mxu0
    %254 = vmatprep.mubr.bf16.mxu0 0
    %255 = vmatmul.mubr.bf16.gmra.mxu0 %v212
    %v256 = vpop.f32.mrf.mxu0
    %v257 = vadd.f32 %v182, %v256
    %v258 = vpop.f32.mrf.mxu0
    %v259 = vpop.f32.mrf.mxu0
    %v260 = vadd.f32 %v182, %v259
    %v261 = vpop.f32.mrf.mxu0
    %262 = vdwg.mxu0
    %263 = vst [vmem:[#allocation2] sm:$0xff] %v249
    %264 = vst [vmem:[#allocation2 + $0x8] sm:$0xff] %v252
    %265 = vst [vmem:[#allocation2 + $0x10] sm:$0xff] %v257
    %266 = vst [vmem:[#allocation2 + $0x18] sm:$0xff] %v260
    // Predicated region
    $region22: #{_forward_jit.1} parent=1 // pred_check
      _
    $region23: #{_forward_jit.1} parent=1 // pred_check_branch
      %268 = sbr.rel (0) target = $region25
    $region24: #{_forward_jit.1} parent=1 // pred_region
      %s270 = ssub.s32 512, 512
      %271 = vsyncadd [#allocation3], %s270
      %s272 = sshll.u32 [#allocation2], 4
      %s273 = int_to_ptr.vmem [resolvable:$true] %s272
      %278 = dma.vmem_to_hbm [thread:$0]  %s273, 512, %s5, [#allocation3], 128, 128, 8
    $region25: #{_forward_jit.1} parent=1 // pred_fallthru
      _
    // Predicated region
    $region26: #{_forward_jit.1} parent=1 // pred_check
      _
    $region27: #{_forward_jit.1} parent=1 // pred_check_branch
      %280 = sbr.rel (0) target = $region29
    $region28: #{_forward_jit.1} parent=1 // pred_region
      %281 = dma.done [#allocation3], 512
    $region29: #{_forward_jit.1} parent=1 // pred_fallthru
      _
    %282 = vsyncpa [#allocation3], 1

</llo_original>
